<compile_context>
chip_gen: v6e
topology: v6e:2x2x1
jax: 0.10.0
libtpu: 0.0.40
codegen_flags: <defaults>
</compile_context>

<pallas_src>
import functools

import jax
import jax.numpy as jnp
from jax.experimental import pallas as pl
from jax.experimental.pallas import tpu as pltpu

_LANES = 128
# Per-buffer-set (in block + out block) byte budget. Double-buffered total ~9 MiB:
# fits v5e's 16 MiB scoped default and v6e/v7x defaults with headroom.
_VMEM_STEP_BYTES = 4 * 1024 * 1024


def _homog_kernel(c_in, x_ref, o_ref):
    # x_ref: (1, C, ...) block, o_ref: (1, C+1, ...) block. Channel is a leading
    # block dim, so both sub-slice stores below are full dense spatial slabs.
    o_ref[0, :c_in] = x_ref[0]
    ones_shape = (o_ref.shape[1] - c_in,) + tuple(o_ref.shape[2:])
    o_ref[0, c_in:] = jnp.ones(ones_shape, dtype=o_ref.dtype)


def homogeneous_coord(x: jax.Array) -> jax.Array:
    """Pallas equivalent of HomogeneousCoord.forward: cat([x, ones], dim=1)."""
    N, C, H, W = x.shape
    HW = H * W
    out_c = C + 1
    itemsize = jnp.dtype(x.dtype).itemsize
    pack = {4: 8, 2: 16, 1: 32}.get(itemsize, 8)  # sublane packing per dtype

    kernel = functools.partial(_homog_kernel, C)
    # Pure copy: read C channels, write C+1 channels, zero flops.
    cost = pl.CostEstimate(
        flops=0,
        transcendentals=0,
        bytes_accessed=N * HW * itemsize * (C + out_c),
    )
    cparams = pltpu.CompilerParams(
        dimension_semantics=("parallel", "parallel"),
    )

    if HW % _LANES == 0:
        # Lane-dense layout: (N, C, S, 128); reshape is contiguous (free).
        S = HW // _LANES
        rows_budget = _VMEM_STEP_BYTES // ((C + out_c) * _LANES * itemsize)
        if rows_budget >= S:
            TS = S  # full extent -> always a legal block dim
        else:
            TS = max(pack, (rows_budget // pack) * pack)
            TS = min(TS, S)
        x4 = x.reshape(N, C, S, _LANES)
        grid = (N, pl.cdiv(S, TS))

        out4 = pl.pallas_call(
            kernel,
            out_shape=jax.ShapeDtypeStruct((N, out_c, S, _LANES), x.dtype),
            grid_spec=pltpu.PrefetchScalarGridSpec(
                num_scalar_prefetch=0,
                grid=grid,
                in_specs=[
                    pl.BlockSpec((1, C, TS, _LANES), lambda n, s: (n, 0, s, 0))
                ],
                out_specs=pl.BlockSpec(
                    (1, out_c, TS, _LANES), lambda n, s: (n, 0, s, 0)
                ),
            ),
            compiler_params=cparams,
            cost_estimate=cost,
        )(x4)
        return out4.reshape(N, out_c, H, W)

    # Ragged spatial size (HW % 128 != 0): no pad/crop passes over HBM. Use a 3-D
    # (N, C, HW) view; lane tiles are multiples of 128 (or full HW) and Pallas
    # masks the single partial tail tile. Channel (second-last dim) is full-extent,
    # which is always a legal block dim.
    x3 = x.reshape(N, C, HW)
    lanes_budget = _VMEM_STEP_BYTES // ((C + out_c) * itemsize)
    if lanes_budget >= HW:
        T = HW  # full extent
    else:
        T = max(_LANES, (lanes_budget // _LANES) * _LANES)
    grid = (N, pl.cdiv(HW, T))

    out3 = pl.pallas_call(
        kernel,
        out_shape=jax.ShapeDtypeStruct((N, out_c, HW), x.dtype),
        grid_spec=pltpu.PrefetchScalarGridSpec(
            num_scalar_prefetch=0,
            grid=grid,
            in_specs=[pl.BlockSpec((1, C, T), lambda n, s: (n, 0, s))],
            out_specs=pl.BlockSpec((1, out_c, T), lambda n, s: (n, 0, s)),
        ),
        compiler_params=cparams,
        cost_estimate=cost,
    )(x3)
    return out3.reshape(N, out_c, H, W)


if __name__ == "__main__":
    key = jax.random.PRNGKey(0)
    N, C, H, W = 2, 4, 16, 16
    x = jax.random.normal(key, (N, C, H, W), dtype=jnp.float32)

    z = jax.block_until_ready(homogeneous_coord(x))

    # Reference check (plain JAX)
    ref = jnp.concatenate([x, jnp.ones((N, 1, H, W), dtype=x.dtype)], axis=1)
    assert z.shape == (N, C + 1, H, W), z.shape
    assert z.dtype == x.dtype
    assert bool(jnp.allclose(z, ref)), "mismatch vs reference"

    # Also exercise the ragged (HW % 128 != 0) path once for correctness.
    H2, W2 = 10, 9
    x2 = jax.random.normal(key, (N, C, H2, W2), dtype=jnp.float32)
    z2 = jax.block_until_ready(homogeneous_coord(x2))
    ref2 = jnp.concatenate([x2, jnp.ones((N, 1, H2, W2), dtype=x2.dtype)], axis=1)
    assert bool(jnp.allclose(z2, ref2)), "mismatch vs reference (ragged path)"

    print("KERNEL_OK")
</pallas_src>

<mosaic_0001>
module attributes {stable_mosaic.version = 11 : i64} {
  func.func @_homog_kernel(%arg0: i32, %arg1: i32, %arg2: memref<1x4x2x128xf32, #tpu.memory_space<vmem>>, %arg3: memref<1x5x2x128xf32, #tpu.memory_space<vmem>>) attributes {dimension_semantics = [#tpu.dimension_semantics<parallel>, #tpu.dimension_semantics<parallel>], iteration_bounds = array<i64: 2, 1>, scalar_prefetch = 0 : i64, scratch_operands = 0 : i64, tpu.core_type = #tpu.core_type<tc>, window_params = [{transform_indices = @transform_0, window_bounds = array<i64: 1, 4, 2, 128>}, {transform_indices = @transform_1, window_bounds = array<i64: 1, 5, 2, 128>}]} {
    %c0 = arith.constant 0 : index
    %c0_0 = arith.constant 0 : index
    %c0_1 = arith.constant 0 : index
    %c0_2 = arith.constant 0 : index
    %0 = vector.load %arg2[%c0, %c0_0, %c0_1, %c0_2] : memref<1x4x2x128xf32, #tpu.memory_space<vmem>>, vector<1x4x2x128xf32>
    %1 = vector.shape_cast %0 : vector<1x4x2x128xf32> to vector<4x2x128xf32>
    %c0_3 = arith.constant 0 : index
    %c0_4 = arith.constant 0 : index
    %c0_5 = arith.constant 0 : index
    %c0_6 = arith.constant 0 : index
    %2 = vector.load %arg3[%c0_3, %c0_4, %c0_5, %c0_6] : memref<1x5x2x128xf32, #tpu.memory_space<vmem>>, vector<1x4x2x128xf32>
    %3 = vector.shape_cast %2 : vector<1x4x2x128xf32> to vector<4x2x128xf32>
    %4 = vector.shape_cast %1 : vector<4x2x128xf32> to vector<1x4x2x128xf32>
    tpu.vector_store %arg3[%c0_3, %c0_4, %c0_5, %c0_6], %4 {strides = array<i32>} : memref<1x5x2x128xf32, #tpu.memory_space<vmem>>, vector<1x4x2x128xf32>,
    %cst = arith.constant 1.000000e+00 : f32
    %5 = vector.broadcast %cst : f32 to vector<1x2x128xf32>
    %c0_7 = arith.constant 0 : index
    %c4 = arith.constant 4 : index
    %c0_8 = arith.constant 0 : index
    %c0_9 = arith.constant 0 : index
    %6 = vector.load %arg3[%c0_7, %c4, %c0_8, %c0_9] : memref<1x5x2x128xf32, #tpu.memory_space<vmem>>, vector<1x1x2x128xf32>
    %7 = vector.shape_cast %6 : vector<1x1x2x128xf32> to vector<1x2x128xf32>
    %8 = vector.shape_cast %5 : vector<1x2x128xf32> to vector<1x1x2x128xf32>
    tpu.vector_store %arg3[%c0_7, %c4, %c0_8, %c0_9], %8 {strides = array<i32>} : memref<1x5x2x128xf32, #tpu.memory_space<vmem>>, vector<1x1x2x128xf32>,
    return
  }
  func.func @transform_0(%arg0: i32, %arg1: i32) -> (i32, i32, i32, i32) {
    %c0_i32 = arith.constant 0 : i32
    %c0_i32_0 = arith.constant 0 : i32
    %c0_i32_1 = arith.constant 0 : i32
    return %arg0, %c0_i32, %arg1, %c0_i32_0 : i32, i32, i32, i32
  }
  func.func @transform_1(%arg0: i32, %arg1: i32) -> (i32, i32, i32, i32) {
    %c0_i32 = arith.constant 0 : i32
    %c0_i32_0 = arith.constant 0 : i32
    %c0_i32_1 = arith.constant 0 : i32
    return %arg0, %c0_i32, %arg1, %c0_i32_0 : i32, i32, i32, i32
  }
}

</mosaic_0001>

<llo_original>
// kernel: tpu_custom_call.1
$region0: #{tpu_custom_call.1}
  #allocation0 [shape = 'u32[]', space=smem, size = 0x4, offset = 0x4, fixed_abs, tag = 'smem constant byte address 0x4 - core index']
  #allocation1 [shape = 'u32[144,128]{1,0:T(1,128)}', space=vmem, size = 0x12000, scoped, tag = 'internal scratch']
  %s0 = inlined_call_operand.hbm [shape: f32[2,4,2,128], index: 0, kind: input, shape index: {}]
  %s1 = inlined_call_operand.hbm [shape: f32[2,5,2,128], index: 1, kind: output, shape index: {}]
  %s2 = sld [smem:[#allocation0]]
  $region41: #{tpu_custom_call.1} parent=0
    _
  %s4 = ssub.s32 1, %s2
  %s5 = scalar_select 0, %s4, %s2
  $region1: #{tpu_custom_call.1} parent=0
    #allocation2 [shape = 'u8[8192]{0}', space=vmem, size = 0x2000, scoped, tag = 'input window, operand 0']
    #allocation3 [shape = 's32[2]{0}', space=sflag, size = 0x8, scoped, tag = 'scoped memory for tpu_custom_call.1']
    #allocation4 [shape = 's32[2]{0}', space=sflag, size = 0x8, scoped, tag = 'scoped memory for tpu_custom_call.1']
    #allocation5 [shape = 'u8[10240]{0}', space=vmem, size = 0x2800, scoped, tag = 'output window, operand 0']
    %6 = vsyncpa [#allocation3], 0
    %s7 = scalar_lea.sflag [#allocation3], 1
    %8 = vsyncpa %s7, 0
    %9 = vsyncpa [#allocation4], 0
    %s10 = scalar_lea.sflag [#allocation4], 1
    %11 = vsyncpa %s10, 0
    loop: start=0, step=1, limit=4
    $region2: #{tpu_custom_call.1} parent=1 // loop_pre_header
      _
    $region3: #{tpu_custom_call.1} parent=1 // loop_header
      %s13 = sphi 0, %s17
      %p14 = scmp.ge.s32.totalorder %s13, 4
      %s20 = sphi 0, %s32
      %s21 = sphi 0, %s28
      %s22 = sphi 0, %s20
      %s23 = sphi 0, %s21
      %s24 = sphi 0, %s22
      %s25 = sphi 0, %s23
      %s37 = sphi 0, %s39
      %s40 = sphi 0, %s37
      %s41 = sphi 0, %s40
      %s57 = sphi 0, %s41
      %s65 = sphi 0, %s67
      %s68 = sphi 0, %s65
      %s69 = sphi 0, %s68
      %s85 = sphi 0, %s69
    $region4: #{tpu_custom_call.1} parent=1 // loop_header_branch
      %16 = sbr.rel (%p14) target = $region8
    $region5: #{tpu_custom_call.1} parent=1 // loop_body
      %s18 = ssub.s32 %s13, 1
      %s19 = ssub.s32 %s13, 2
      %s26 = sadd.s32 1, %s21
      %p27 = scmp.ge.s32.totalorder %s26, 1
      %s28 = scalar_select %p27, 0, %s26
      %s29 = sadd.s32 1, %s20
      %s30 = scalar_select %p27, %s29, %s20
      %p31 = scmp.ge.s32.totalorder %s30, 2
      %s32 = scalar_select %p31, 0, %s30
      %s33 = ssub.s32 %s20, %s32
      %s34 = ssub.s32 %s21, %s28
      %s35 = sor.u32 %s33, %s34
      %p36 = scmp.eq.s32.totalorder %s35, 0
      %s38 = sadd.s32 %s37, 1
      %s39 = scalar_select %p36, %s37, %s38
      %p42 = pneg %p36
      %p43 = scmp.eq.s32.totalorder %s13, 1
      %p44 = por %p42, %p43
      %p45 = scmp.ne.s32.totalorder %s37, %s40
      %p46 = scmp.eq.s32.totalorder %s13, 0
      %p47 = por %p45, %p46
      %p48 = scmp.ne.s32.totalorder %s37, %s40
      %p49 = scmp.eq.s32.totalorder %s18, 1
      %p50 = por %p48, %p49
      %p51 = scmp.ne.s32.totalorder %s40, %s41
      %p52 = scmp.eq.s32.totalorder %s18, 0
      %p53 = por %p51, %p52
      %p54 = scmp.ne.s32.totalorder %s40, %s41
      %p55 = scmp.eq.s32.totalorder %s19, 1
      %p56 = por %p54, %p55
      %p58 = scmp.ne.s32.totalorder %s41, %s57
      %p59 = scmp.eq.s32.totalorder %s19, 0
      %p60 = por %p58, %p59
      %s61 = ssub.s32 %s20, %s32
      %s62 = ssub.s32 %s21, %s28
      %s63 = sor.u32 %s61, %s62
      %p64 = scmp.eq.s32.totalorder %s63, 0
      %s66 = sadd.s32 %s65, 1
      %s67 = scalar_select %p64, %s65, %s66
      %p70 = pneg %p64
      %p71 = scmp.eq.s32.totalorder %s13, 1
      %p72 = por %p70, %p71
      %p73 = scmp.ne.s32.totalorder %s65, %s68
      %p74 = scmp.eq.s32.totalorder %s13, 0
      %p75 = por %p73, %p74
      %p76 = scmp.ne.s32.totalorder %s65, %s68
      %p77 = scmp.eq.s32.totalorder %s18, 1
      %p78 = por %p76, %p77
      %p79 = scmp.ne.s32.totalorder %s68, %s69
      %p80 = scmp.eq.s32.totalorder %s18, 0
      %p81 = por %p79, %p80
      %p82 = scmp.ne.s32.totalorder %s68, %s69
      %p83 = scmp.eq.s32.totalorder %s19, 1
      %p84 = por %p82, %p83
      %p86 = scmp.ne.s32.totalorder %s69, %s85
      %p87 = scmp.eq.s32.totalorder %s19, 0
      %p88 = por %p86, %p87
      %p89 = scmp.le.s32.totalorder 1, %s13
      %p90 = scmp.lt.s32.totalorder %s13, 3
      %p91 = pnand %p89, %p90
      %p92 = pneg %p91
      // Predicated region
      $region9: #{tpu_custom_call.1} parent=5 // pred_check
        _
      $region10: #{tpu_custom_call.1} parent=5 // pred_check_branch
        %94 = sbr.rel (%p91) target = $region12
      $region11: #{tpu_custom_call.1} parent=5 // pred_region
        %s95 = ssub.s32 %s13, 1
      $region12: #{tpu_custom_call.1} parent=5 // pred_fallthru
        _
      %p96 = scmp.lt.s32.totalorder %s13, 2
      // Predicated region
      $region13: #{tpu_custom_call.1} parent=5 // pred_check
        %p97 = pneg %p96
      $region14: #{tpu_custom_call.1} parent=5 // pred_check_branch
        %99 = sbr.rel (%p97) target = $region16
      $region15: #{tpu_custom_call.1} parent=5 // pred_region
        // Predicated region
        $region17: #{tpu_custom_call.1} parent=15 // pred_check
          %p100 = pneg %p47
        $region18: #{tpu_custom_call.1} parent=15 // pred_check_branch
          %102 = sbr.rel (%p100) target = $region20
        $region19: #{tpu_custom_call.1} parent=15 // pred_region
          %s103 = sand.u32 %s37, 1
          %s104 = scalar_lea.sflag [#allocation3], %s103
          %s105 = sand.u32 %s37, 1
          %s106 = smul.addr %s105, 8
          %s107 = scalar_lea.vmem [#allocation2], %s106
          %s109 = ssub.s32 128, 128
          %110 = vsyncadd %s104, %s109
          %s111 = smul.addr %s20, 4
          %s112 = sadd.s32 %s21, %s111
          %s113 = smul.addr %s112, 32
          %s114 = scalar_lea.hbm %s0, %s113
          %s115 = sshll.u32 %s107, 4
          %s116 = int_to_ptr.vmem [resolvable:$true] %s115
          %121 = dma.hbm_to_vmem [thread:$0]  %s114, 128, %s116, %s104, 32, 32, 2
        $region20: #{tpu_custom_call.1} parent=15 // pred_fallthru
          _
      $region16: #{tpu_custom_call.1} parent=5 // pred_fallthru
        _
      %p122 = scmp.le.s32.totalorder 1, %s13
      %p123 = scmp.lt.s32.totalorder %s13, 3
      %p124 = pnand %p122, %p123
      %p125 = pneg %p124
      // Predicated region
      $region21: #{tpu_custom_call.1} parent=5 // pred_check
        _
      $region22: #{tpu_custom_call.1} parent=5 // pred_check_branch
        %127 = sbr.rel (%p124) target = $region24
      $region23: #{tpu_custom_call.1} parent=5 // pred_region
        %s128 = ssub.s32 %s13, 1
        %s129 = sand.u32 %s40, 1
        %s130 = scalar_lea.sflag [#allocation3], %s129
        %s131 = sand.u32 %s40, 1
        %s132 = smul.addr %s131, 8
        %s133 = scalar_lea.vmem [#allocation2], %s132
        // Predicated region
        $region25: #{tpu_custom_call.1} parent=23 // pred_check
          %p134 = pneg %p53
        $region26: #{tpu_custom_call.1} parent=23 // pred_check_branch
          %136 = sbr.rel (%p134) target = $region28
        $region27: #{tpu_custom_call.1} parent=23 // pred_region
          %137 = dma.done %s130, 128
        $region28: #{tpu_custom_call.1} parent=23 // pred_fallthru
          _
        %s138 = sand.u32 %s40, 1
        %s139 = scalar_lea.sflag [#allocation3], %s138
        %s140 = sand.u32 %s40, 1
        %s141 = smul.addr %s140, 8
        %s142 = scalar_lea.vmem [#allocation2], %s141
        %p143 = pneg %p53
        %p144 = pneg %p50
        %p145 = pneg %p81
        %p146 = pneg %p78
        %s147 = sand.u32 %s68, 1
        %s148 = scalar_lea.sflag [#allocation4], %s147
        %s149 = sand.u32 %s68, 1
        %s150 = smul.addr %s149, 10
        %s151 = scalar_lea.vmem [#allocation5], %s150
        %v152 = vld [vmem:[%s133] sm:$0x3]
        %v153 = vld [vmem:[%s133 + $0x2] sm:$0x3]
        %v154 = vld [vmem:[%s133 + $0x4] sm:$0x3]
        %v155 = vld [vmem:[%s133 + $0x6] sm:$0x3]
        %156 = vst [vmem:[%s151] sm:$0x3] %v152
        %157 = vst [vmem:[%s151 + $0x2] sm:$0x3] %v153
        %158 = vst [vmem:[%s151 + $0x4] sm:$0x3] %v154
        %159 = vst [vmem:[%s151 + $0x6] sm:$0x3] %v155
        %s160 = scalar_lea.vmem %s151, 8 [#allocation5]
        %161 = vst [vmem:[%s160] sm:$0x3] 1.0
        %s162 = sand.u32 %s68, 1
        %s163 = scalar_lea.sflag [#allocation4], %s162
        %s164 = sand.u32 %s68, 1
        %s165 = smul.addr %s164, 10
        %s166 = scalar_lea.vmem [#allocation5], %s165
        // Predicated region
        $region29: #{tpu_custom_call.1} parent=23 // pred_check
          %p167 = pneg %p78
        $region30: #{tpu_custom_call.1} parent=23 // pred_check_branch
          %169 = sbr.rel (%p167) target = $region32
        $region31: #{tpu_custom_call.1} parent=23 // pred_region
          %s171 = ssub.s32 160, 160
          %172 = vsyncadd %s163, %s171
          %s173 = smul.addr %s22, 5
          %s174 = sadd.s32 %s23, %s173
          %s175 = smul.addr %s174, 32
          %s176 = scalar_lea.hbm %s1, %s175
          %s177 = sshll.u32 %s166, 4
          %s178 = int_to_ptr.vmem [resolvable:$true] %s177
          %183 = dma.vmem_to_hbm [thread:$0]  %s178, 160, %s176, %s163, 32, 32, 2
        $region32: #{tpu_custom_call.1} parent=23 // pred_fallthru
          _
      $region24: #{tpu_custom_call.1} parent=5 // pred_fallthru
        _
      %p184 = scmp.le.s32.totalorder 2, %s13
      // Predicated region
      $region33: #{tpu_custom_call.1} parent=5 // pred_check
        %p185 = pneg %p184
      $region34: #{tpu_custom_call.1} parent=5 // pred_check_branch
        %187 = sbr.rel (%p185) target = $region36
      $region35: #{tpu_custom_call.1} parent=5 // pred_region
        %s188 = ssub.s32 %s13, 2
        // Predicated region
        $region37: #{tpu_custom_call.1} parent=35 // pred_check
          %p189 = pneg %p84
        $region38: #{tpu_custom_call.1} parent=35 // pred_check_branch
          %191 = sbr.rel (%p189) target = $region40
        $region39: #{tpu_custom_call.1} parent=35 // pred_region
          %s192 = sand.u32 %s69, 1
          %s193 = scalar_lea.sflag [#allocation4], %s192
          %s194 = sand.u32 %s69, 1
          %s195 = smul.addr %s194, 10
          %s196 = scalar_lea.vmem [#allocation5], %s195
          %197 = dma.done %s193, 160
        $region40: #{tpu_custom_call.1} parent=35 // pred_fallthru
          _
      $region36: #{tpu_custom_call.1} parent=5 // pred_fallthru
        _
    $region6: #{tpu_custom_call.1} parent=1 // loop_footer
      %s17 = sadd.s32 1, %s13
    $region7: #{tpu_custom_call.1} parent=1 // loop_footer_branch
      %12 = sbr.rel target = $region3
    $region8: #{tpu_custom_call.1} parent=1 // loop_exit
      _
    %198 = vsyncpa [#allocation3], 1
    %s199 = scalar_lea.sflag [#allocation3], 1
    %200 = vsyncpa %s199, 1
    %201 = vsyncpa [#allocation4], 1
    %s202 = scalar_lea.sflag [#allocation4], 1
    %203 = vsyncpa %s202, 1

</llo_original>
